<compile_context>
chip_gen: v6e
topology: v6e:2x2x1
jax: 0.10.0
libtpu: 0.0.40
codegen_flags: <defaults>
</compile_context>

<pallas_src>
import functools

import jax
import jax.numpy as jnp
from jax.experimental import pallas as pl
from jax.experimental.pallas import tpu as pltpu

_C = 128           # padded channel width (lane-dense)
_NEG = -3.0e38     # "minus infinity" fill for the masked max


def _vmem_cap_bytes():
    """~80% of this generation's physical VMEM (fallback: 64 MiB, safe on all)."""
    try:
        info = pltpu.get_tpu_info()
        cap = int(getattr(info, "vmem_capacity_bytes", 64 * 1024 * 1024))
    except Exception:
        cap = 64 * 1024 * 1024
    return int(cap * 0.8)


_VMEM_CAP = _vmem_cap_bytes()


# ----------------------------------------------------------------------------
# Fused Pallas kernel: 6x (GCN layer + relu) -> scatter_max pool -> MLP head
# ----------------------------------------------------------------------------
def _fused_net_kernel(a_ref, x_ref, negb_ref, cw_ref, cb_ref,
                      w1_ref, b1_ref, w2_ref, b2_ref, o_ref, pooled_ref):
    cdt = jnp.bfloat16

    a_bf = a_ref[...]                                  # [N, N] bf16 (pre-cast)
    h = x_ref[...]                                     # [N, 128] f32 (zero-padded)

    # 6 fused GCN layers (unrolled; bf16 weights indexed statically from stack).
    for layer in range(6):
        w = cw_ref[layer]                              # [128, 128] bf16
        xw = jnp.dot(h.astype(cdt), w,
                     preferred_element_type=jnp.float32)          # X @ W   (MXU)
        agg = jnp.dot(a_bf, xw.astype(cdt),
                      preferred_element_type=jnp.float32)         # A_hat @ XW (MXU)
        h = jnp.maximum(agg + cb_ref[layer], 0.0)      # bias + relu in f32 (VPU)

    # scatter_max pooling: per-graph masked max over nodes, written row-by-row
    # into a [G, 128] VMEM scratch (no concatenate / relayout).
    # negb[n, g] = 0 if node n belongs to graph g, else -3e38 (additive mask).
    negb = negb_ref[...]                               # [N, G] f32
    num_graphs = negb.shape[1]
    for g in range(num_graphs):
        masked = h + negb[:, g:g + 1]                  # [N, 128]
        pooled_ref[pl.ds(g, 1), :] = jnp.max(masked, axis=0, keepdims=True)
    pooled = pooled_ref[...]                           # [G, 128] f32

    # MLP head (padded to 128 lanes; padded rows/cols are zero).
    h1 = jnp.dot(pooled.astype(cdt), w1_ref[...],
                 preferred_element_type=jnp.float32)
    h1 = jnp.maximum(h1 + b1_ref[...], 0.0)
    out = jnp.dot(h1.astype(cdt), w2_ref[...],
                  preferred_element_type=jnp.float32)
    o_ref[...] = out + b2_ref[...]                     # [G, 128] (slice to 10 outside)


def _full_spec(shape):
    ndim = len(shape)
    return pl.BlockSpec(shape, lambda _nd=ndim: (0,) * _nd)


# ----------------------------------------------------------------------------
# Plain-JAX glue: dense normalized adjacency, pooling mask, padding
# ----------------------------------------------------------------------------
def build_normalized_adjacency(edge_index, num_nodes):
    # A (both edge directions assumed present) + self-loops, then
    # symmetric normalization D^-1/2 (A + I) D^-1/2 (GCNConv default).
    src, dst = edge_index
    a = jnp.zeros((num_nodes, num_nodes), jnp.float32)
    a = a.at[dst, src].add(1.0)
    a = a + jnp.eye(num_nodes, dtype=jnp.float32)
    deg = jnp.sum(a, axis=1)
    dinv = jax.lax.rsqrt(deg)
    return a * dinv[:, None] * dinv[None, :]


def pack_params(params):
    """Zero-pad all weights/biases to 128 lanes; weights stored bf16, biases f32."""
    ws, bs = [], []
    for i in range(6):
        w = params[f"conv{i + 1}_w"]
        b = params[f"conv{i + 1}_b"]
        ws.append(jnp.zeros((_C, _C), jnp.float32).at[: w.shape[0], : w.shape[1]].set(w))
        bs.append(jnp.zeros((1, _C), jnp.float32).at[0, : b.shape[0]].set(b))
    return {
        "conv_w": jnp.stack(ws).astype(jnp.bfloat16),              # [6, 128, 128] bf16
        "conv_b": jnp.stack(bs),                                   # [6, 1, 128]   f32
        "lin1_w": jnp.zeros((_C, _C), jnp.float32)
                     .at[:128, :64].set(params["lin1_w"]).astype(jnp.bfloat16),
        "lin1_b": jnp.zeros((1, _C), jnp.float32).at[0, :64].set(params["lin1_b"]),
        "lin2_w": jnp.zeros((_C, _C), jnp.float32)
                     .at[:64, :10].set(params["lin2_w"]).astype(jnp.bfloat16),
        "lin2_b": jnp.zeros((1, _C), jnp.float32).at[0, :10].set(params["lin2_b"]),
    }


@functools.partial(jax.jit, static_argnames=("num_graphs",))
def net_forward(x, edge_index, batch, packed, num_graphs):
    n, f_in = x.shape
    a_hat = build_normalized_adjacency(edge_index, n).astype(jnp.bfloat16)  # [N,N] bf16
    x_pad = jnp.zeros((n, _C), jnp.float32).at[:, :f_in].set(x)             # [N,128]
    # additive pooling mask: 0 where node belongs to graph g, else -3e38
    negb = jnp.where(batch[:, None] == jnp.arange(num_graphs)[None, :],
                     0.0, _NEG).astype(jnp.float32)                         # [N, G]

    args = (a_hat, x_pad, negb,
            packed["conv_w"], packed["conv_b"],
            packed["lin1_w"], packed["lin1_b"],
            packed["lin2_w"], packed["lin2_b"])

    # VMEM budget derived from the actual footprint (x2 headroom for compiler
    # temps / buffering), clamped to ~80% of this generation's physical VMEM.
    footprint = (2 * n * n                       # bf16 A_hat
                 + 4 * n * _C * 4                # x_pad + ~3 live f32 activations
                 + 4 * n * num_graphs            # pooling mask
                 + 2 * 8 * _C * _C               # bf16 weight stacks (6 conv + 2 lin)
                 + 4 * 8 * _C                    # f32 biases
                 + 4 * num_graphs * _C * 2)      # pooled scratch + output
    vmem_limit = int(max(16 * 1024 * 1024, min(_VMEM_CAP, 2 * footprint)))

    flops = 6 * (2 * n * _C * _C + 2 * n * n * _C) + 4 * num_graphs * _C * _C
    bytes_accessed = (2 * n * n                  # bf16 A_hat
                      + 4 * n * _C               # x_pad
                      + 4 * n * num_graphs       # mask
                      + 2 * 6 * _C * _C + 4 * 6 * _C
                      + 2 * 2 * _C * _C + 4 * 2 * _C
                      + 4 * num_graphs * _C)

    out_pad = pl.pallas_call(
        _fused_net_kernel,
        out_shape=jax.ShapeDtypeStruct((num_graphs, _C), jnp.float32),
        in_specs=[_full_spec(a.shape) for a in args],
        out_specs=_full_spec((num_graphs, _C)),
        scratch_shapes=[pltpu.VMEM((num_graphs, _C), jnp.float32)],
        compiler_params=pltpu.CompilerParams(vmem_limit_bytes=vmem_limit),
        cost_estimate=pl.CostEstimate(
            flops=flops, transcendentals=0, bytes_accessed=bytes_accessed),
    )(*args)
    return out_pad[:, :10]                                          # [G, 10]


# ----------------------------------------------------------------------------
# Deterministic parameter init (shapes match the PyTorch module)
# ----------------------------------------------------------------------------
def init_params(key):
    dims = [2, 16, 32, 48, 64, 96, 128]
    params = {}
    for i in range(6):
        key, kw = jax.random.split(key)
        c_in, c_out = dims[i], dims[i + 1]
        params[f"conv{i+1}_w"] = (
            jax.random.normal(kw, (c_in, c_out), jnp.float32) * (1.0 / jnp.sqrt(c_in))
        )
        params[f"conv{i+1}_b"] = jnp.zeros((c_out,), jnp.float32)
    key, k1, k2 = jax.random.split(key, 3)
    params["lin1_w"] = jax.random.normal(k1, (128, 64), jnp.float32) * (1.0 / jnp.sqrt(128.0))
    params["lin1_b"] = jnp.zeros((64,), jnp.float32)
    params["lin2_w"] = jax.random.normal(k2, (64, 10), jnp.float32) * (1.0 / jnp.sqrt(64.0))
    params["lin2_b"] = jnp.zeros((10,), jnp.float32)
    return params


if __name__ == "__main__":
    key = jax.random.PRNGKey(0)
    key, kx = jax.random.split(key)

    # Small synthetic batched graph: 2 graphs x 8 nodes = 16 nodes, ring edges.
    # (For throughput, batch many more graphs per call so matmul rows >= 128/256.)
    num_nodes = 16
    num_graphs = 2
    x = jax.random.normal(kx, (num_nodes, 2), jnp.float32)          # node features
    batch = jnp.array([0] * 8 + [1] * 8, jnp.int32)                 # node -> graph id

    # Directed edge list containing both directions (ring within each graph).
    src, dst = [], []
    for g in range(num_graphs):
        base = g * 8
        for i in range(8):
            a, b = base + i, base + (i + 1) % 8
            src += [a, b]
            dst += [b, a]
    edge_index = jnp.array([src, dst], jnp.int32)                   # [2, E]

    params = init_params(key)
    packed = pack_params(params)

    out = net_forward(x, edge_index, batch, packed, num_graphs)     # [2, 10]
    jax.block_until_ready(out)
    assert out.shape == (num_graphs, 10) and out.dtype == jnp.float32
    print("KERNEL_OK")
</pallas_src>

<mosaic_0001>
module attributes {stable_mosaic.version = 11 : i64} {
  func.func private @main(%arg0: i32) attributes {dimension_semantics = [#tpu.dimension_semantics<core_parallel>], iteration_bounds = array<i64: 2>, tpu.core_type = #tpu.core_type<sc_scalar_subcore>, window_params = []} {
    return
  }
}

module attributes {stable_mosaic.version = 11 : i64} {
  func.func private @main(%arg0: i32) attributes {dimension_semantics = [#tpu.dimension_semantics<core_parallel>], iteration_bounds = array<i64: 2>, tpu.core_type = #tpu.core_type<sc_scalar_subcore>, window_params = []} {
    return
  }
}

module attributes {stable_mosaic.version = 11 : i64} {
  func.func @_fused_net_kernel(%arg0: memref<16x16xbf16, #tpu.memory_space<vmem>>, %arg1: memref<16x128xf32, #tpu.memory_space<vmem>>, %arg2: memref<16x2xf32, #tpu.memory_space<vmem>>, %arg3: memref<6x128x128xbf16, #tpu.memory_space<vmem>>, %arg4: memref<6x1x128xf32, #tpu.memory_space<vmem>>, %arg5: memref<128x128xbf16, #tpu.memory_space<vmem>>, %arg6: memref<1x128xf32, #tpu.memory_space<vmem>>, %arg7: memref<128x128xbf16, #tpu.memory_space<vmem>>, %arg8: memref<1x128xf32, #tpu.memory_space<vmem>>, %arg9: memref<2x128xf32, #tpu.memory_space<vmem>>, %arg10: memref<2x128xf32, #tpu.memory_space<vmem>>) attributes {dimension_semantics = [], scalar_prefetch = 0 : i64, scratch_operands = 1 : i64, tpu.core_type = #tpu.core_type<tc>} {
    %c0 = arith.constant 0 : index
    %c0_0 = arith.constant 0 : index
    %0 = vector.load %arg0[%c0, %c0_0] : memref<16x16xbf16, #tpu.memory_space<vmem>>, vector<16x16xbf16>
    %c0_1 = arith.constant 0 : index
    %c0_2 = arith.constant 0 : index
    %1 = vector.load %arg1[%c0_1, %c0_2] : memref<16x128xf32, #tpu.memory_space<vmem>>, vector<16x128xf32>
    %c0_3 = arith.constant 0 : index
    %c0_4 = arith.constant 0 : index
    %c0_5 = arith.constant 0 : index
    %2 = vector.load %arg3[%c0_3, %c0_4, %c0_5] : memref<6x128x128xbf16, #tpu.memory_space<vmem>>, vector<1x128x128xbf16>
    %3 = vector.shape_cast %2 : vector<1x128x128xbf16> to vector<128x128xbf16>
    %4 = arith.truncf %1 : vector<16x128xf32> to vector<16x128xbf16>
    %cst = arith.constant dense<0.000000e+00> : vector<16x128xf32>
    %5 = tpu.matmul %4, %3, %cst {dimension_numbers = #tpu.dot_dimension_numbers<[1], [0], [0], [1], [0, 0, 1, 1], [], []>} : vector<16x128xbf16>, vector<128x128xbf16>, vector<16x128xf32> -> vector<16x128xf32>
    %6 = arith.truncf %5 : vector<16x128xf32> to vector<16x128xbf16>
    %cst_6 = arith.constant dense<0.000000e+00> : vector<16x128xf32>
    %7 = tpu.matmul %0, %6, %cst_6 {dimension_numbers = #tpu.dot_dimension_numbers<[1], [0], [0], [1], [0, 0, 1, 1], [], []>} : vector<16x16xbf16>, vector<16x128xbf16>, vector<16x128xf32> -> vector<16x128xf32>
    %c0_7 = arith.constant 0 : index
    %c0_8 = arith.constant 0 : index
    %c0_9 = arith.constant 0 : index
    %8 = vector.load %arg4[%c0_7, %c0_8, %c0_9] : memref<6x1x128xf32, #tpu.memory_space<vmem>>, vector<1x1x128xf32>
    %9 = vector.shape_cast %8 : vector<1x1x128xf32> to vector<1x128xf32>
    %10 = vector.broadcast %9 : vector<1x128xf32> to vector<16x128xf32>
    %11 = arith.addf %7, %10 : vector<16x128xf32>
    %cst_10 = arith.constant 0.000000e+00 : f32
    %12 = vector.broadcast %cst_10 : f32 to vector<16x128xf32>
    %13 = arith.maximumf %11, %12 : vector<16x128xf32>
    %c1 = arith.constant 1 : index
    %c0_11 = arith.constant 0 : index
    %c0_12 = arith.constant 0 : index
    %14 = vector.load %arg3[%c1, %c0_11, %c0_12] : memref<6x128x128xbf16, #tpu.memory_space<vmem>>, vector<1x128x128xbf16>
    %15 = vector.shape_cast %14 : vector<1x128x128xbf16> to vector<128x128xbf16>
    %16 = arith.truncf %13 : vector<16x128xf32> to vector<16x128xbf16>
    %cst_13 = arith.constant dense<0.000000e+00> : vector<16x128xf32>
    %17 = tpu.matmul %16, %15, %cst_13 {dimension_numbers = #tpu.dot_dimension_numbers<[1], [0], [0], [1], [0, 0, 1, 1], [], []>} : vector<16x128xbf16>, vector<128x128xbf16>, vector<16x128xf32> -> vector<16x128xf32>
    %18 = arith.truncf %17 : vector<16x128xf32> to vector<16x128xbf16>
    %cst_14 = arith.constant dense<0.000000e+00> : vector<16x128xf32>
    %19 = tpu.matmul %0, %18, %cst_14 {dimension_numbers = #tpu.dot_dimension_numbers<[1], [0], [0], [1], [0, 0, 1, 1], [], []>} : vector<16x16xbf16>, vector<16x128xbf16>, vector<16x128xf32> -> vector<16x128xf32>
    %c1_15 = arith.constant 1 : index
    %c0_16 = arith.constant 0 : index
    %c0_17 = arith.constant 0 : index
    %20 = vector.load %arg4[%c1_15, %c0_16, %c0_17] : memref<6x1x128xf32, #tpu.memory_space<vmem>>, vector<1x1x128xf32>
    %21 = vector.shape_cast %20 : vector<1x1x128xf32> to vector<1x128xf32>
    %22 = vector.broadcast %21 : vector<1x128xf32> to vector<16x128xf32>
    %23 = arith.addf %19, %22 : vector<16x128xf32>
    %cst_18 = arith.constant 0.000000e+00 : f32
    %24 = vector.broadcast %cst_18 : f32 to vector<16x128xf32>
    %25 = arith.maximumf %23, %24 : vector<16x128xf32>
    %c2 = arith.constant 2 : index
    %c0_19 = arith.constant 0 : index
    %c0_20 = arith.constant 0 : index
    %26 = vector.load %arg3[%c2, %c0_19, %c0_20] : memref<6x128x128xbf16, #tpu.memory_space<vmem>>, vector<1x128x128xbf16>
    %27 = vector.shape_cast %26 : vector<1x128x128xbf16> to vector<128x128xbf16>
    %28 = arith.truncf %25 : vector<16x128xf32> to vector<16x128xbf16>
    %cst_21 = arith.constant dense<0.000000e+00> : vector<16x128xf32>
    %29 = tpu.matmul %28, %27, %cst_21 {dimension_numbers = #tpu.dot_dimension_numbers<[1], [0], [0], [1], [0, 0, 1, 1], [], []>} : vector<16x128xbf16>, vector<128x128xbf16>, vector<16x128xf32> -> vector<16x128xf32>
    %30 = arith.truncf %29 : vector<16x128xf32> to vector<16x128xbf16>
    %cst_22 = arith.constant dense<0.000000e+00> : vector<16x128xf32>
    %31 = tpu.matmul %0, %30, %cst_22 {dimension_numbers = #tpu.dot_dimension_numbers<[1], [0], [0], [1], [0, 0, 1, 1], [], []>} : vector<16x16xbf16>, vector<16x128xbf16>, vector<16x128xf32> -> vector<16x128xf32>
    %c2_23 = arith.constant 2 : index
    %c0_24 = arith.constant 0 : index
    %c0_25 = arith.constant 0 : index
    %32 = vector.load %arg4[%c2_23, %c0_24, %c0_25] : memref<6x1x128xf32, #tpu.memory_space<vmem>>, vector<1x1x128xf32>
    %33 = vector.shape_cast %32 : vector<1x1x128xf32> to vector<1x128xf32>
    %34 = vector.broadcast %33 : vector<1x128xf32> to vector<16x128xf32>
    %35 = arith.addf %31, %34 : vector<16x128xf32>
    %cst_26 = arith.constant 0.000000e+00 : f32
    %36 = vector.broadcast %cst_26 : f32 to vector<16x128xf32>
    %37 = arith.maximumf %35, %36 : vector<16x128xf32>
    %c3 = arith.constant 3 : index
    %c0_27 = arith.constant 0 : index
    %c0_28 = arith.constant 0 : index
    %38 = vector.load %arg3[%c3, %c0_27, %c0_28] : memref<6x128x128xbf16, #tpu.memory_space<vmem>>, vector<1x128x128xbf16>
    %39 = vector.shape_cast %38 : vector<1x128x128xbf16> to vector<128x128xbf16>
    %40 = arith.truncf %37 : vector<16x128xf32> to vector<16x128xbf16>
    %cst_29 = arith.constant dense<0.000000e+00> : vector<16x128xf32>
    %41 = tpu.matmul %40, %39, %cst_29 {dimension_numbers = #tpu.dot_dimension_numbers<[1], [0], [0], [1], [0, 0, 1, 1], [], []>} : vector<16x128xbf16>, vector<128x128xbf16>, vector<16x128xf32> -> vector<16x128xf32>
    %42 = arith.truncf %41 : vector<16x128xf32> to vector<16x128xbf16>
    %cst_30 = arith.constant dense<0.000000e+00> : vector<16x128xf32>
    %43 = tpu.matmul %0, %42, %cst_30 {dimension_numbers = #tpu.dot_dimension_numbers<[1], [0], [0], [1], [0, 0, 1, 1], [], []>} : vector<16x16xbf16>, vector<16x128xbf16>, vector<16x128xf32> -> vector<16x128xf32>
    %c3_31 = arith.constant 3 : index
    %c0_32 = arith.constant 0 : index
    %c0_33 = arith.constant 0 : index
    %44 = vector.load %arg4[%c3_31, %c0_32, %c0_33] : memref<6x1x128xf32, #tpu.memory_space<vmem>>, vector<1x1x128xf32>
    %45 = vector.shape_cast %44 : vector<1x1x128xf32> to vector<1x128xf32>
    %46 = vector.broadcast %45 : vector<1x128xf32> to vector<16x128xf32>
    %47 = arith.addf %43, %46 : vector<16x128xf32>
    %cst_34 = arith.constant 0.000000e+00 : f32
    %48 = vector.broadcast %cst_34 : f32 to vector<16x128xf32>
    %49 = arith.maximumf %47, %48 : vector<16x128xf32>
    %c4 = arith.constant 4 : index
    %c0_35 = arith.constant 0 : index
    %c0_36 = arith.constant 0 : index
    %50 = vector.load %arg3[%c4, %c0_35, %c0_36] : memref<6x128x128xbf16, #tpu.memory_space<vmem>>, vector<1x128x128xbf16>
    %51 = vector.shape_cast %50 : vector<1x128x128xbf16> to vector<128x128xbf16>
    %52 = arith.truncf %49 : vector<16x128xf32> to vector<16x128xbf16>
    %cst_37 = arith.constant dense<0.000000e+00> : vector<16x128xf32>
    %53 = tpu.matmul %52, %51, %cst_37 {dimension_numbers = #tpu.dot_dimension_numbers<[1], [0], [0], [1], [0, 0, 1, 1], [], []>} : vector<16x128xbf16>, vector<128x128xbf16>, vector<16x128xf32> -> vector<16x128xf32>
    %54 = arith.truncf %53 : vector<16x128xf32> to vector<16x128xbf16>
    %cst_38 = arith.constant dense<0.000000e+00> : vector<16x128xf32>
    %55 = tpu.matmul %0, %54, %cst_38 {dimension_numbers = #tpu.dot_dimension_numbers<[1], [0], [0], [1], [0, 0, 1, 1], [], []>} : vector<16x16xbf16>, vector<16x128xbf16>, vector<16x128xf32> -> vector<16x128xf32>
    %c4_39 = arith.constant 4 : index
    %c0_40 = arith.constant 0 : index
    %c0_41 = arith.constant 0 : index
    %56 = vector.load %arg4[%c4_39, %c0_40, %c0_41] : memref<6x1x128xf32, #tpu.memory_space<vmem>>, vector<1x1x128xf32>
    %57 = vector.shape_cast %56 : vector<1x1x128xf32> to vector<1x128xf32>
    %58 = vector.broadcast %57 : vector<1x128xf32> to vector<16x128xf32>
    %59 = arith.addf %55, %58 : vector<16x128xf32>
    %cst_42 = arith.constant 0.000000e+00 : f32
    %60 = vector.broadcast %cst_42 : f32 to vector<16x128xf32>
    %61 = arith.maximumf %59, %60 : vector<16x128xf32>
    %c5 = arith.constant 5 : index
    %c0_43 = arith.constant 0 : index
    %c0_44 = arith.constant 0 : index
    %62 = vector.load %arg3[%c5, %c0_43, %c0_44] : memref<6x128x128xbf16, #tpu.memory_space<vmem>>, vector<1x128x128xbf16>
    %63 = vector.shape_cast %62 : vector<1x128x128xbf16> to vector<128x128xbf16>
    %64 = arith.truncf %61 : vector<16x128xf32> to vector<16x128xbf16>
    %cst_45 = arith.constant dense<0.000000e+00> : vector<16x128xf32>
    %65 = tpu.matmul %64, %63, %cst_45 {dimension_numbers = #tpu.dot_dimension_numbers<[1], [0], [0], [1], [0, 0, 1, 1], [], []>} : vector<16x128xbf16>, vector<128x128xbf16>, vector<16x128xf32> -> vector<16x128xf32>
    %66 = arith.truncf %65 : vector<16x128xf32> to vector<16x128xbf16>
    %cst_46 = arith.constant dense<0.000000e+00> : vector<16x128xf32>
    %67 = tpu.matmul %0, %66, %cst_46 {dimension_numbers = #tpu.dot_dimension_numbers<[1], [0], [0], [1], [0, 0, 1, 1], [], []>} : vector<16x16xbf16>, vector<16x128xbf16>, vector<16x128xf32> -> vector<16x128xf32>
    %c5_47 = arith.constant 5 : index
    %c0_48 = arith.constant 0 : index
    %c0_49 = arith.constant 0 : index
    %68 = vector.load %arg4[%c5_47, %c0_48, %c0_49] : memref<6x1x128xf32, #tpu.memory_space<vmem>>, vector<1x1x128xf32>
    %69 = vector.shape_cast %68 : vector<1x1x128xf32> to vector<1x128xf32>
    %70 = vector.broadcast %69 : vector<1x128xf32> to vector<16x128xf32>
    %71 = arith.addf %67, %70 : vector<16x128xf32>
    %cst_50 = arith.constant 0.000000e+00 : f32
    %72 = vector.broadcast %cst_50 : f32 to vector<16x128xf32>
    %73 = arith.maximumf %71, %72 : vector<16x128xf32>
    %c0_51 = arith.constant 0 : index
    %c0_52 = arith.constant 0 : index
    %74 = vector.load %arg2[%c0_51, %c0_52] : memref<16x2xf32, #tpu.memory_space<vmem>>, vector<16x2xf32>
    %75 = vector.extract_strided_slice %74 {offsets = [0, 0], sizes = [16, 1], strides = [1, 1]} : vector<16x2xf32> to vector<16x1xf32>
    %76 = vector.broadcast %75 : vector<16x1xf32> to vector<16x128xf32>
    %77 = arith.addf %73, %76 : vector<16x128xf32>
    %cst_53 = arith.constant dense<0xFF800000> : vector<128xf32>
    %78 = vector.multi_reduction <maximumf>, %77, %cst_53 [0] : vector<16x128xf32> to vector<128xf32>
    %79 = vector.shape_cast %78 : vector<128xf32> to vector<1x128xf32>
    %c0_54 = arith.constant 0 : index
    %c0_55 = arith.constant 0 : index
    %80 = vector.load %arg10[%c0_54, %c0_55] : memref<2x128xf32, #tpu.memory_space<vmem>>, vector<1x128xf32>
    tpu.vector_store %arg10[%c0_54, %c0_55], %79 {strides = array<i32>} : memref<2x128xf32, #tpu.memory_space<vmem>>, vector<1x128xf32>,
    %81 = vector.extract_strided_slice %74 {offsets = [0, 1], sizes = [16, 1], strides = [1, 1]} : vector<16x2xf32> to vector<16x1xf32>
    %82 = vector.broadcast %81 : vector<16x1xf32> to vector<16x128xf32>
    %83 = arith.addf %73, %82 : vector<16x128xf32>
    %cst_56 = arith.constant dense<0xFF800000> : vector<128xf32>
    %84 = vector.multi_reduction <maximumf>, %83, %cst_56 [0] : vector<16x128xf32> to vector<128xf32>
    %85 = vector.shape_cast %84 : vector<128xf32> to vector<1x128xf32>
    %c1_57 = arith.constant 1 : index
    %c0_58 = arith.constant 0 : index
    %86 = vector.load %arg10[%c1_57, %c0_58] : memref<2x128xf32, #tpu.memory_space<vmem>>, vector<1x128xf32>
    tpu.vector_store %arg10[%c1_57, %c0_58], %85 {strides = array<i32>} : memref<2x128xf32, #tpu.memory_space<vmem>>, vector<1x128xf32>,
    %c0_59 = arith.constant 0 : index
    %c0_60 = arith.constant 0 : index
    %87 = vector.load %arg10[%c0_59, %c0_60] : memref<2x128xf32, #tpu.memory_space<vmem>>, vector<2x128xf32>
    %88 = arith.truncf %87 : vector<2x128xf32> to vector<2x128xbf16>
    %c0_61 = arith.constant 0 : index
    %c0_62 = arith.constant 0 : index
    %89 = vector.load %arg5[%c0_61, %c0_62] : memref<128x128xbf16, #tpu.memory_space<vmem>>, vector<128x128xbf16>
    %cst_63 = arith.constant dense<0.000000e+00> : vector<2x128xf32>
    %90 = tpu.matmul %88, %89, %cst_63 {dimension_numbers = #tpu.dot_dimension_numbers<[1], [0], [0], [1], [0, 0, 1, 1], [], []>} : vector<2x128xbf16>, vector<128x128xbf16>, vector<2x128xf32> -> vector<2x128xf32>
    %c0_64 = arith.constant 0 : index
    %c0_65 = arith.constant 0 : index
    %91 = vector.load %arg6[%c0_64, %c0_65] : memref<1x128xf32, #tpu.memory_space<vmem>>, vector<1x128xf32>
    %92 = vector.broadcast %91 : vector<1x128xf32> to vector<2x128xf32>
    %93 = arith.addf %90, %92 : vector<2x128xf32>
    %cst_66 = arith.constant 0.000000e+00 : f32
    %94 = vector.broadcast %cst_66 : f32 to vector<2x128xf32>
    %95 = arith.maximumf %93, %94 : vector<2x128xf32>
    %96 = arith.truncf %95 : vector<2x128xf32> to vector<2x128xbf16>
    %c0_67 = arith.constant 0 : index
    %c0_68 = arith.constant 0 : index
    %97 = vector.load %arg7[%c0_67, %c0_68] : memref<128x128xbf16, #tpu.memory_space<vmem>>, vector<128x128xbf16>
    %cst_69 = arith.constant dense<0.000000e+00> : vector<2x128xf32>
    %98 = tpu.matmul %96, %97, %cst_69 {dimension_numbers = #tpu.dot_dimension_numbers<[1], [0], [0], [1], [0, 0, 1, 1], [], []>} : vector<2x128xbf16>, vector<128x128xbf16>, vector<2x128xf32> -> vector<2x128xf32>
    %c0_70 = arith.constant 0 : index
    %c0_71 = arith.constant 0 : index
    %99 = vector.load %arg8[%c0_70, %c0_71] : memref<1x128xf32, #tpu.memory_space<vmem>>, vector<1x128xf32>
    %100 = vector.broadcast %99 : vector<1x128xf32> to vector<2x128xf32>
    %101 = arith.addf %98, %100 : vector<2x128xf32>
    %c0_72 = arith.constant 0 : index
    %c0_73 = arith.constant 0 : index
    %102 = vector.load %arg9[%c0_72, %c0_73] : memref<2x128xf32, #tpu.memory_space<vmem>>, vector<2x128xf32>
    tpu.vector_store %arg9[%c0_72, %c0_73], %101 {strides = array<i32>} : memref<2x128xf32, #tpu.memory_space<vmem>>, vector<2x128xf32>,
    return
  }
}

</mosaic_0001>

<llo_original>
// kernel: net_forward.1
$region0: #{net_forward.1}
  #allocation0 [shape = 'u32[]', space=smem, size = 0x4, offset = 0x4, fixed_abs, tag = 'smem constant byte address 0x4 - core index']
  #allocation1 [shape = 'u32[144,128]{1,0:T(1,128)}', space=vmem, size = 0x12000, scoped, tag = 'internal scratch']
  #allocation2 [shape = 'f32[2,128]{1,0:T(2,128)}', space=vmem, size = 0x400, scoped, tag = 'scratch operand']
  %s0 = inlined_call_operand.vmem [shape: bf16[16,16], index: 0, kind: input, shape index: {}]
  %s1 = inlined_call_operand.vmem [shape: f32[16,128], index: 1, kind: input, shape index: {}]
  %s2 = inlined_call_operand.vmem [shape: f32[16,2], index: 2, kind: input, shape index: {}]
  %s3 = inlined_call_operand.vmem [shape: bf16[6,128,128], index: 3, kind: input, shape index: {}]
  %s4 = inlined_call_operand.vmem [shape: f32[6,1,128], index: 4, kind: input, shape index: {}]
  %s5 = inlined_call_operand.vmem [shape: bf16[128,128], index: 5, kind: input, shape index: {}]
  %s6 = inlined_call_operand.vmem [shape: f32[1,128], index: 6, kind: input, shape index: {}]
  %s7 = inlined_call_operand.vmem [shape: bf16[128,128], index: 7, kind: input, shape index: {}]
  %s8 = inlined_call_operand.vmem [shape: f32[1,128], index: 8, kind: input, shape index: {}]
  %s9 = inlined_call_operand.hbm [shape: f32[2,128], index: 9, kind: output, shape index: {}]
  %s10 = sld [smem:[#allocation0]]
  $region46: #{net_forward.1} parent=0
    _
  %s12 = ssub.s32 1, %s10
  %s13 = scalar_select 0, %s12, %s10
  $region1: #{net_forward.1} parent=0
    #allocation3 [shape = 'u8[1024]{0}', space=vmem, size = 0x400, scoped, tag = 'output window, operand 0, single buffered']
    #allocation4 [shape = 's32[1]{0}', space=sflag, size = 0x4, scoped, tag = 'scoped memory for net_forward.1']
    %14 = vsyncpa [#allocation4], 0
    // Predicated region
    $region2: #{net_forward.1} parent=1 // pred_check
      _
    $region3: #{net_forward.1} parent=1 // pred_check_branch
      %16 = sbr.rel (0) target = $region5
    $region4: #{net_forward.1} parent=1 // pred_region
      _
    $region5: #{net_forward.1} parent=1 // pred_fallthru
      _
    // Predicated region
    $region6: #{net_forward.1} parent=1 // pred_check
      _
    $region7: #{net_forward.1} parent=1 // pred_check_branch
      %18 = sbr.rel (0) target = $region9
    $region8: #{net_forward.1} parent=1 // pred_region
      _
    $region9: #{net_forward.1} parent=1 // pred_fallthru
      _
    // Predicated region
    $region10: #{net_forward.1} parent=1 // pred_check
      _
    $region11: #{net_forward.1} parent=1 // pred_check_branch
      %20 = sbr.rel (0) target = $region13
    $region12: #{net_forward.1} parent=1 // pred_region
      _
    $region13: #{net_forward.1} parent=1 // pred_fallthru
      _
    // Predicated region
    $region14: #{net_forward.1} parent=1 // pred_check
      _
    $region15: #{net_forward.1} parent=1 // pred_check_branch
      %22 = sbr.rel (0) target = $region17
    $region16: #{net_forward.1} parent=1 // pred_region
      _
    $region17: #{net_forward.1} parent=1 // pred_fallthru
      _
    // Predicated region
    $region18: #{net_forward.1} parent=1 // pred_check
      _
    $region19: #{net_forward.1} parent=1 // pred_check_branch
      %24 = sbr.rel (0) target = $region21
    $region20: #{net_forward.1} parent=1 // pred_region
      _
    $region21: #{net_forward.1} parent=1 // pred_fallthru
      _
    // Predicated region
    $region22: #{net_forward.1} parent=1 // pred_check
      _
    $region23: #{net_forward.1} parent=1 // pred_check_branch
      %26 = sbr.rel (0) target = $region25
    $region24: #{net_forward.1} parent=1 // pred_region
      _
    $region25: #{net_forward.1} parent=1 // pred_fallthru
      _
    // Predicated region
    $region26: #{net_forward.1} parent=1 // pred_check
      _
    $region27: #{net_forward.1} parent=1 // pred_check_branch
      %28 = sbr.rel (0) target = $region29
    $region28: #{net_forward.1} parent=1 // pred_region
      _
    $region29: #{net_forward.1} parent=1 // pred_fallthru
      _
    // Predicated region
    $region30: #{net_forward.1} parent=1 // pred_check
      _
    $region31: #{net_forward.1} parent=1 // pred_check_branch
      %30 = sbr.rel (0) target = $region33
    $region32: #{net_forward.1} parent=1 // pred_region
      _
    $region33: #{net_forward.1} parent=1 // pred_fallthru
      _
    // Predicated region
    $region34: #{net_forward.1} parent=1 // pred_check
      _
    $region35: #{net_forward.1} parent=1 // pred_check_branch
      %32 = sbr.rel (0) target = $region37
    $region36: #{net_forward.1} parent=1 // pred_region
      _
    $region37: #{net_forward.1} parent=1 // pred_fallthru
      _
    %v34 = vld [vmem:[%s0] sm:$0xf]
    %v35 = vld [vmem:[%s0 + $0x4] sm:$0xf]
    %v36 = vld [vmem:[%s1] sm:$0xff]
    %v37 = vld [vmem:[%s1 + $0x8] sm:$0xff]
    %v38 = vld [vmem:[%s3] sm:$0xf]
    %v39 = vld [vmem:[%s3 + $0x4] sm:$0xf]
    %v40 = vld [vmem:[%s3 + $0x8] sm:$0xf]
    %v41 = vld [vmem:[%s3 + $0xc] sm:$0xf]
    %v42 = vld [vmem:[%s3 + $0x10] sm:$0xf]
    %v43 = vld [vmem:[%s3 + $0x14] sm:$0xf]
    %v44 = vld [vmem:[%s3 + $0x18] sm:$0xf]
    %v45 = vld [vmem:[%s3 + $0x1c] sm:$0xf]
    %v46 = vld [vmem:[%s3 + $0x20] sm:$0xf]
    %v47 = vld [vmem:[%s3 + $0x24] sm:$0xf]
    %v48 = vld [vmem:[%s3 + $0x28] sm:$0xf]
    %v49 = vld [vmem:[%s3 + $0x2c] sm:$0xf]
    %v50 = vld [vmem:[%s3 + $0x30] sm:$0xf]
    %v51 = vld [vmem:[%s3 + $0x34] sm:$0xf]
    %v52 = vld [vmem:[%s3 + $0x38] sm:$0xf]
    %v53 = vld [vmem:[%s3 + $0x3c] sm:$0xf]
    %v54 = vpack.c.bf16 %v37, %v36
    %v71 = vunpack.c.l.b16 %v38
    %v72 = vunpack.c.l.b16 %v39
    %v73 = vunpack.c.l.b16 %v40
    %v74 = vunpack.c.l.b16 %v41
    %v75 = vunpack.c.l.b16 %v42
    %v76 = vunpack.c.l.b16 %v43
    %v77 = vunpack.c.l.b16 %v44
    %v78 = vunpack.c.l.b16 %v45
    %v79 = vunpack.c.l.b16 %v46
    %v80 = vunpack.c.l.b16 %v47
    %v81 = vunpack.c.l.b16 %v48
    %v82 = vunpack.c.l.b16 %v49
    %v83 = vunpack.c.l.b16 %v50
    %v84 = vunpack.c.l.b16 %v51
    %v85 = vunpack.c.l.b16 %v52
    %v86 = vunpack.c.l.b16 %v53
    %v87 = vpack.c.b16 %v72, %v71
    %v88 = vpack.c.b16 %v74, %v73
    %v89 = vpack.c.b16 %v76, %v75
    %v90 = vpack.c.b16 %v78, %v77
    %v91 = vpack.c.b16 %v80, %v79
    %v92 = vpack.c.b16 %v82, %v81
    %v93 = vpack.c.b16 %v84, %v83
    %v94 = vpack.c.b16 %v86, %v85
    %103 = vmatprep.subr.bf16.mxu0 0
    %104 = vmatpush1.bf16.msra.mxu0 %v94
    %105 = vmatprep.subr.bf16.mxu0 0
    %106 = vmatpush1.bf16.msra.mxu0 %v93
    %107 = vmatprep.subr.bf16.mxu0 0
    %108 = vmatpush1.bf16.msra.mxu0 %v92
    %109 = vmatprep.subr.bf16.mxu0 0
    %110 = vmatpush1.bf16.msra.mxu0 %v91
    %111 = vmatprep.subr.bf16.mxu0 0
    %112 = vmatpush1.bf16.msra.mxu0 %v90
    %113 = vmatprep.subr.bf16.mxu0 0
    %114 = vmatpush1.bf16.msra.mxu0 %v89
    %115 = vmatprep.subr.bf16.mxu0 0
    %116 = vmatpush1.bf16.msra.mxu0 %v88
    %117 = vmatprep.subr.bf16.mxu0 0
    %118 = vmatpush1.bf16.msra.mxu0 %v87
    %119 = vmatprep.subr.bf16.mxu0 0
    %120 = vmatpush2.bf16.msra.mxu0 0
    %121 = vmatprep.subr.bf16.mxu0 0
    %122 = vmatpush2.bf16.msra.mxu0 0
    %123 = vmatprep.subr.bf16.mxu0 0
    %124 = vmatpush2.bf16.msra.mxu0 0
    %125 = vmatprep.subr.bf16.mxu0 0
    %126 = vmatpush2.bf16.msra.mxu0 0
    %127 = vmatprep.subr.bf16.mxu0 0
    %128 = vmatpush2.bf16.msra.mxu0 0
    %129 = vmatprep.subr.bf16.mxu0 0
    %130 = vmatpush2.bf16.msra.mxu0 0
    %131 = vmatprep.subr.bf16.mxu0 0
    %132 = vmatpush2.bf16.msra.mxu0 0
    %133 = vmatprep.subr.bf16.mxu0 0
    %134 = vmatpush2.bf16.msra.mxu0 0
    %135 = vmatprep.mubr.bf16.mxu0 0
    %136 = vmatmul.mubr.bf16.gmra.mxu0 %v54
    %v137 = vpop.f32.mrf.mxu0
    %v138 = vadd.f32 0.0, %v137
    %v139 = vpop.f32.mrf.mxu0
    %v140 = vpop.f32.mrf.mxu0
    %v141 = vadd.f32 0.0, %v140
    %v142 = vpop.f32.mrf.mxu0
    %143 = vdwg.mxu0
    %v144 = vpack.c.bf16 %v141, %v138
    %v145 = vld [vmem:[%s4] sm:$0x1]
    %v147 = vlaneseq
    %v148 = vshrl.u32 %v147, 7
    %v149 = vsub.s32 0, %v148
    %v150 = vrot.slane %v145, %v149
    %v154 = vunpack.c.l.b16 %v34
    %v155 = vunpack.c.l.b16 %v35
    %v156 = vpack.c.b16 %v155, %v154
    %vm157 = vcmask 130048
    %v159 = vsel %vm157, %v156, 0
    %161 = vmatprep.subr.bf16.mxu0 0
    %162 = vmatpush1.bf16.msra.mxu0 0
    %163 = vmatprep.subr.bf16.mxu0 0
    %164 = vmatpush1.bf16.msra.mxu0 0
    %165 = vmatprep.subr.bf16.mxu0 0
    %166 = vmatpush1.bf16.msra.mxu0 0
    %167 = vmatprep.subr.bf16.mxu0 0
    %168 = vmatpush1.bf16.msra.mxu0 0
    %169 = vmatprep.subr.bf16.mxu0 0
    %170 = vmatpush1.bf16.msra.mxu0 0
    %171 = vmatprep.subr.bf16.mxu0 0
    %172 = vmatpush1.bf16.msra.mxu0 0
    %173 = vmatprep.subr.bf16.mxu0 0
    %174 = vmatpush1.bf16.msra.mxu0 0
    %175 = vmatprep.subr.bf16.mxu0 0
    %176 = vmatpush1.bf16.msra.mxu0 %v144
    %177 = vmatprep.subr.bf16.mxu0 0
    %178 = vmatpush2.bf16.msra.mxu0 0
    %179 = vmatprep.subr.bf16.mxu0 0
    %180 = vmatpush2.bf16.msra.mxu0 0
    %181 = vmatprep.subr.bf16.mxu0 0
    %182 = vmatpush2.bf16.msra.mxu0 0
    %183 = vmatprep.subr.bf16.mxu0 0
    %184 = vmatpush2.bf16.msra.mxu0 0
    %185 = vmatprep.subr.bf16.mxu0 0
    %186 = vmatpush2.bf16.msra.mxu0 0
    %187 = vmatprep.subr.bf16.mxu0 0
    %188 = vmatpush2.bf16.msra.mxu0 0
    %189 = vmatprep.subr.bf16.mxu0 0
    %190 = vmatpush2.bf16.msra.mxu0 0
    %191 = vmatprep.subr.bf16.mxu0 0
    %192 = vmatpush2.bf16.msra.mxu0 0
    %193 = vmatprep.mubr.bf16.mxu0 0
    %194 = vmatmul.mubr.bf16.gmra.mxu0 %v159
    %v195 = vpop.f32.mrf.mxu0
    %v196 = vadd.f32 %v150, %v195
    %v197 = vpop.f32.mrf.mxu0
    %v198 = vpop.f32.mrf.mxu0
    %v199 = vadd.f32 %v150, %v198
    %v200 = vpop.f32.mrf.mxu0
    %201 = vdwg.mxu0
    %v202 = vmax.f32 %v196, 0.0
    %v203 = vmax.f32 %v199, 0.0
    %s204 = scalar_lea.vmem %s3, 64
    %v205 = vld [vmem:[%s204] sm:$0xf]
    %v206 = vld [vmem:[%s204 + $0x4] sm:$0xf]
    %v207 = vld [vmem:[%s204 + $0x8] sm:$0xf]
    %v208 = vld [vmem:[%s204 + $0xc] sm:$0xf]
    %v209 = vld [vmem:[%s204 + $0x10] sm:$0xf]
    %v210 = vld [vmem:[%s204 + $0x14] sm:$0xf]
    %v211 = vld [vmem:[%s204 + $0x18] sm:$0xf]
    %v212 = vld [vmem:[%s204 + $0x1c] sm:$0xf]
    %v213 = vld [vmem:[%s204 + $0x20] sm:$0xf]
    %v214 = vld [vmem:[%s204 + $0x24] sm:$0xf]
    %v215 = vld [vmem:[%s204 + $0x28] sm:$0xf]
    %v216 = vld [vmem:[%s204 + $0x2c] sm:$0xf]
    %v217 = vld [vmem:[%s204 + $0x30] sm:$0xf]
    %v218 = vld [vmem:[%s204 + $0x34] sm:$0xf]
    %v219 = vld [vmem:[%s204 + $0x38] sm:$0xf]
    %v220 = vld [vmem:[%s204 + $0x3c] sm:$0xf]
    %v221 = vpack.c.bf16 %v203, %v202
    %v238 = vunpack.c.l.b16 %v205
    %v239 = vunpack.c.l.b16 %v206
    %v240 = vunpack.c.l.b16 %v207
    %v241 = vunpack.c.l.b16 %v208
    %v242 = vunpack.c.l.b16 %v209
    %v243 = vunpack.c.l.b16 %v210
    %v244 = vunpack.c.l.b16 %v211
    %v245 = vunpack.c.l.b16 %v212
    %v246 = vunpack.c.l.b16 %v213
    %v247 = vunpack.c.l.b16 %v214
    %v248 = vunpack.c.l.b16 %v215
    %v249 = vunpack.c.l.b16 %v216
    %v250 = vunpack.c.l.b16 %v217
    %v251 = vunpack.c.l.b16 %v218
    %v252 = vunpack.c.l.b16 %v219
    %v253 = vunpack.c.l.b16 %v220
    %v254 = vpack.c.b16 %v239, %v238
    %v255 = vpack.c.b16 %v241, %v240
    %v256 = vpack.c.b16 %v243, %v242
    %v257 = vpack.c.b16 %v245, %v244
    %v258 = vpack.c.b16 %v247, %v246
    %v259 = vpack.c.b16 %v249, %v248
    %v260 = vpack.c.b16 %v251, %v250
    %v261 = vpack.c.b16 %v253, %v252
    %270 = vmatprep.subr.bf16.mxu0 0
    %271 = vmatpush1.bf16.msra.mxu0 %v261
    %272 = vmatprep.subr.bf16.mxu0 0
    %273 = vmatpush1.bf16.msra.mxu0 %v260
    %274 = vmatprep.subr.bf16.mxu0 0
    %275 = vmatpush1.bf16.msra.mxu0 %v259
    %276 = vmatprep.subr.bf16.mxu0 0
    %277 = vmatpush1.bf16.msra.mxu0 %v258
    %278 = vmatprep.subr.bf16.mxu0 0
    %279 = vmatpush1.bf16.msra.mxu0 %v257
    %280 = vmatprep.subr.bf16.mxu0 0
    %281 = vmatpush1.bf16.msra.mxu0 %v256
    %282 = vmatprep.subr.bf16.mxu0 0
    %283 = vmatpush1.bf16.msra.mxu0 %v255
    %284 = vmatprep.subr.bf16.mxu0 0
    %285 = vmatpush1.bf16.msra.mxu0 %v254
    %286 = vmatprep.subr.bf16.mxu0 0
    %287 = vmatpush2.bf16.msra.mxu0 0
    %288 = vmatprep.subr.bf16.mxu0 0
    %289 = vmatpush2.bf16.msra.mxu0 0
    %290 = vmatprep.subr.bf16.mxu0 0
    %291 = vmatpush2.bf16.msra.mxu0 0
    %292 = vmatprep.subr.bf16.mxu0 0
    %293 = vmatpush2.bf16.msra.mxu0 0
    %294 = vmatprep.subr.bf16.mxu0 0
    %295 = vmatpush2.bf16.msra.mxu0 0
    %296 = vmatprep.subr.bf16.mxu0 0
    %297 = vmatpush2.bf16.msra.mxu0 0
    %298 = vmatprep.subr.bf16.mxu0 0
    %299 = vmatpush2.bf16.msra.mxu0 0
    %300 = vmatprep.subr.bf16.mxu0 0
    %301 = vmatpush2.bf16.msra.mxu0 0
    %302 = vmatprep.mubr.bf16.mxu0 0
    %303 = vmatmul.mubr.bf16.gmra.mxu0 %v221
    %v304 = vpop.f32.mrf.mxu0
    %v305 = vadd.f32 0.0, %v304
    %v306 = vpop.f32.mrf.mxu0
    %v307 = vpop.f32.mrf.mxu0
    %v308 = vadd.f32 0.0, %v307
    %v309 = vpop.f32.mrf.mxu0
    %310 = vdwg.mxu0
    %v311 = vpack.c.bf16 %v308, %v305
    %s312 = scalar_lea.vmem %s4, 1
    %v313 = vld [vmem:[%s312] sm:$0x1]
    %v315 = vlaneseq
    %v316 = vshrl.u32 %v315, 7
    %v317 = vsub.s32 0, %v316
    %v318 = vrot.slane %v313, %v317
    %320 = vmatprep.subr.bf16.mxu0 0
    %321 = vmatpush1.bf16.msra.mxu0 0
    %322 = vmatprep.subr.bf16.mxu0 0
    %323 = vmatpush1.bf16.msra.mxu0 0
    %324 = vmatprep.subr.bf16.mxu0 0
    %325 = vmatpush1.bf16.msra.mxu0 0
    %326 = vmatprep.subr.bf16.mxu0 0
    %327 = vmatpush1.bf16.msra.mxu0 0
    %328 = vmatprep.subr.bf16.mxu0 0
    %329 = vmatpush1.bf16.msra.mxu0 0
    %330 = vmatprep.subr.bf16.mxu0 0
    %331 = vmatpush1.bf16.msra.mxu0 0
    %332 = vmatprep.subr.bf16.mxu0 0
    %333 = vmatpush1.bf16.msra.mxu0 0
    %334 = vmatprep.subr.bf16.mxu0 0
    %335 = vmatpush1.bf16.msra.mxu0 %v311
    %336 = vmatprep.subr.bf16.mxu0 0
    %337 = vmatpush2.bf16.msra.mxu0 0
    %338 = vmatprep.subr.bf16.mxu0 0
    %339 = vmatpush2.bf16.msra.mxu0 0
    %340 = vmatprep.subr.bf16.mxu0 0
    %341 = vmatpush2.bf16.msra.mxu0 0
    %342 = vmatprep.subr.bf16.mxu0 0
    %343 = vmatpush2.bf16.msra.mxu0 0
    %344 = vmatprep.subr.bf16.mxu0 0
    %345 = vmatpush2.bf16.msra.mxu0 0
    %346 = vmatprep.subr.bf16.mxu0 0
    %347 = vmatpush2.bf16.msra.mxu0 0
    %348 = vmatprep.subr.bf16.mxu0 0
    %349 = vmatpush2.bf16.msra.mxu0 0
    %350 = vmatprep.subr.bf16.mxu0 0
    %351 = vmatpush2.bf16.msra.mxu0 0
    %352 = vmatprep.mubr.bf16.mxu0 0
    %353 = vmatmul.mubr.bf16.gmra.mxu0 %v159
    %v354 = vpop.f32.mrf.mxu0
    %v355 = vadd.f32 %v318, %v354
    %v356 = vpop.f32.mrf.mxu0
    %v357 = vpop.f32.mrf.mxu0
    %v358 = vadd.f32 %v318, %v357
    %v359 = vpop.f32.mrf.mxu0
    %360 = vdwg.mxu0
    %v361 = vmax.f32 %v355, 0.0
    %v362 = vmax.f32 %v358, 0.0
    %s363 = scalar_lea.vmem %s3, 128
    %v364 = vld [vmem:[%s363] sm:$0xf]
    %v365 = vld [vmem:[%s363 + $0x4] sm:$0xf]
    %v366 = vld [vmem:[%s363 + $0x8] sm:$0xf]
    %v367 = vld [vmem:[%s363 + $0xc] sm:$0xf]
    %v368 = vld [vmem:[%s363 + $0x10] sm:$0xf]
    %v369 = vld [vmem:[%s363 + $0x14] sm:$0xf]
    %v370 = vld [vmem:[%s363 + $0x18] sm:$0xf]
    %v371 = vld [vmem:[%s363 + $0x1c] sm:$0xf]
    %v372 = vld [vmem:[%s363 + $0x20] sm:$0xf]
    %v373 = vld [vmem:[%s363 + $0x24] sm:$0xf]
    %v374 = vld [vmem:[%s363 + $0x28] sm:$0xf]
    %v375 = vld [vmem:[%s363 + $0x2c] sm:$0xf]
    %v376 = vld [vmem:[%s363 + $0x30] sm:$0xf]
    %v377 = vld [vmem:[%s363 + $0x34] sm:$0xf]
    %v378 = vld [vmem:[%s363 + $0x38] sm:$0xf]
    %v379 = vld [vmem:[%s363 + $0x3c] sm:$0xf]
    %v380 = vpack.c.bf16 %v362, %v361
    %v397 = vunpack.c.l.b16 %v364
    %v398 = vunpack.c.l.b16 %v365
    %v399 = vunpack.c.l.b16 %v366
    %v400 = vunpack.c.l.b16 %v367
    %v401 = vunpack.c.l.b16 %v368
    %v402 = vunpack.c.l.b16 %v369
    %v403 = vunpack.c.l.b16 %v370
    %v404 = vunpack.c.l.b16 %v371
    %v405 = vunpack.c.l.b16 %v372
    %v406 = vunpack.c.l.b16 %v373
    %v407 = vunpack.c.l.b16 %v374
    %v408 = vunpack.c.l.b16 %v375
    %v409 = vunpack.c.l.b16 %v376
    %v410 = vunpack.c.l.b16 %v377
    %v411 = vunpack.c.l.b16 %v378
    %v412 = vunpack.c.l.b16 %v379
    %v413 = vpack.c.b16 %v398, %v397
    %v414 = vpack.c.b16 %v400, %v399
    %v415 = vpack.c.b16 %v402, %v401
    %v416 = vpack.c.b16 %v404, %v403
    %v417 = vpack.c.b16 %v406, %v405
    %v418 = vpack.c.b16 %v408, %v407
    %v419 = vpack.c.b16 %v410, %v409
    %v420 = vpack.c.b16 %v412, %v411
    %429 = vmatprep.subr.bf16.mxu0 0
    %430 = vmatpush1.bf16.msra.mxu0 %v420
    %431 = vmatprep.subr.bf16.mxu0 0
    %432 = vmatpush1.bf16.msra.mxu0 %v419
    %433 = vmatprep.subr.bf16.mxu0 0
    %434 = vmatpush1.bf16.msra.mxu0 %v418
    %435 = vmatprep.subr.bf16.mxu0 0
    %436 = vmatpush1.bf16.msra.mxu0 %v417
    %437 = vmatprep.subr.bf16.mxu0 0
    %438 = vmatpush1.bf16.msra.mxu0 %v416
    %439 = vmatprep.subr.bf16.mxu0 0
    %440 = vmatpush1.bf16.msra.mxu0 %v415
    %441 = vmatprep.subr.bf16.mxu0 0
    %442 = vmatpush1.bf16.msra.mxu0 %v414
    %443 = vmatprep.subr.bf16.mxu0 0
    %444 = vmatpush1.bf16.msra.mxu0 %v413
    %445 = vmatprep.subr.bf16.mxu0 0
    %446 = vmatpush2.bf16.msra.mxu0 0
    %447 = vmatprep.subr.bf16.mxu0 0
    %448 = vmatpush2.bf16.msra.mxu0 0
    %449 = vmatprep.subr.bf16.mxu0 0
    %450 = vmatpush2.bf16.msra.mxu0 0
    %451 = vmatprep.subr.bf16.mxu0 0
    %452 = vmatpush2.bf16.msra.mxu0 0
    %453 = vmatprep.subr.bf16.mxu0 0
    %454 = vmatpush2.bf16.msra.mxu0 0
    %455 = vmatprep.subr.bf16.mxu0 0
    %456 = vmatpush2.bf16.msra.mxu0 0
    %457 = vmatprep.subr.bf16.mxu0 0
    %458 = vmatpush2.bf16.msra.mxu0 0
    %459 = vmatprep.subr.bf16.mxu0 0
    %460 = vmatpush2.bf16.msra.mxu0 0
    %461 = vmatprep.mubr.bf16.mxu0 0
    %462 = vmatmul.mubr.bf16.gmra.mxu0 %v380
    %v463 = vpop.f32.mrf.mxu0
    %v464 = vadd.f32 0.0, %v463
    %v465 = vpop.f32.mrf.mxu0
    %v466 = vpop.f32.mrf.mxu0
    %v467 = vadd.f32 0.0, %v466
    %v468 = vpop.f32.mrf.mxu0
    %469 = vdwg.mxu0
    %v470 = vpack.c.bf16 %v467, %v464
    %s471 = scalar_lea.vmem %s4, 2
    %v472 = vld [vmem:[%s471] sm:$0x1]
    %v474 = vlaneseq
    %v475 = vshrl.u32 %v474, 7
    %v476 = vsub.s32 0, %v475
    %v477 = vrot.slane %v472, %v476
    %479 = vmatprep.subr.bf16.mxu0 0
    %480 = vmatpush1.bf16.msra.mxu0 0
    %481 = vmatprep.subr.bf16.mxu0 0
    %482 = vmatpush1.bf16.msra.mxu0 0
    %483 = vmatprep.subr.bf16.mxu0 0
    %484 = vmatpush1.bf16.msra.mxu0 0
    %485 = vmatprep.subr.bf16.mxu0 0
    %486 = vmatpush1.bf16.msra.mxu0 0
    %487 = vmatprep.subr.bf16.mxu0 0
    %488 = vmatpush1.bf16.msra.mxu0 0
    %489 = vmatprep.subr.bf16.mxu0 0
    %490 = vmatpush1.bf16.msra.mxu0 0
    %491 = vmatprep.subr.bf16.mxu0 0
    %492 = vmatpush1.bf16.msra.mxu0 0
    %493 = vmatprep.subr.bf16.mxu0 0
    %494 = vmatpush1.bf16.msra.mxu0 %v470
    %495 = vmatprep.subr.bf16.mxu0 0
    %496 = vmatpush2.bf16.msra.mxu0 0
    %497 = vmatprep.subr.bf16.mxu0 0
    %498 = vmatpush2.bf16.msra.mxu0 0
    %499 = vmatprep.subr.bf16.mxu0 0
    %500 = vmatpush2.bf16.msra.mxu0 0
    %501 = vmatprep.subr.bf16.mxu0 0
    %502 = vmatpush2.bf16.msra.mxu0 0
    %503 = vmatprep.subr.bf16.mxu0 0
    %504 = vmatpush2.bf16.msra.mxu0 0
    %505 = vmatprep.subr.bf16.mxu0 0
    %506 = vmatpush2.bf16.msra.mxu0 0
    %507 = vmatprep.subr.bf16.mxu0 0
    %508 = vmatpush2.bf16.msra.mxu0 0
    %509 = vmatprep.subr.bf16.mxu0 0
    %510 = vmatpush2.bf16.msra.mxu0 0
    %511 = vmatprep.mubr.bf16.mxu0 0
    %512 = vmatmul.mubr.bf16.gmra.mxu0 %v159
    %v513 = vpop.f32.mrf.mxu0
    %v514 = vadd.f32 %v477, %v513
    %v515 = vpop.f32.mrf.mxu0
    %v516 = vpop.f32.mrf.mxu0
    %v517 = vadd.f32 %v477, %v516
    %v518 = vpop.f32.mrf.mxu0
    %519 = vdwg.mxu0
    %v520 = vmax.f32 %v514, 0.0
    %v521 = vmax.f32 %v517, 0.0
    %s522 = scalar_lea.vmem %s3, 192
    %v523 = vld [vmem:[%s522] sm:$0xf]
    %v524 = vld [vmem:[%s522 + $0x4] sm:$0xf]
    %v525 = vld [vmem:[%s522 + $0x8] sm:$0xf]
    %v526 = vld [vmem:[%s522 + $0xc] sm:$0xf]
    %v527 = vld [vmem:[%s522 + $0x10] sm:$0xf]
    %v528 = vld [vmem:[%s522 + $0x14] sm:$0xf]
    %v529 = vld [vmem:[%s522 + $0x18] sm:$0xf]
    %v530 = vld [vmem:[%s522 + $0x1c] sm:$0xf]
    %v531 = vld [vmem:[%s522 + $0x20] sm:$0xf]
    %v532 = vld [vmem:[%s522 + $0x24] sm:$0xf]
    %v533 = vld [vmem:[%s522 + $0x28] sm:$0xf]
    %v534 = vld [vmem:[%s522 + $0x2c] sm:$0xf]
    %v535 = vld [vmem:[%s522 + $0x30] sm:$0xf]
    %v536 = vld [vmem:[%s522 + $0x34] sm:$0xf]
    %v537 = vld [vmem:[%s522 + $0x38] sm:$0xf]
    %v538 = vld [vmem:[%s522 + $0x3c] sm:$0xf]
    %v539 = vpack.c.bf16 %v521, %v520
    %v556 = vunpack.c.l.b16 %v523
    %v557 = vunpack.c.l.b16 %v524
    %v558 = vunpack.c.l.b16 %v525
    %v559 = vunpack.c.l.b16 %v526
    %v560 = vunpack.c.l.b16 %v527
    %v561 = vunpack.c.l.b16 %v528
    %v562 = vunpack.c.l.b16 %v529
    %v563 = vunpack.c.l.b16 %v530
    %v564 = vunpack.c.l.b16 %v531
    %v565 = vunpack.c.l.b16 %v532
    %v566 = vunpack.c.l.b16 %v533
    %v567 = vunpack.c.l.b16 %v534
    %v568 = vunpack.c.l.b16 %v535
    %v569 = vunpack.c.l.b16 %v536
    %v570 = vunpack.c.l.b16 %v537
    %v571 = vunpack.c.l.b16 %v538
    %v572 = vpack.c.b16 %v557, %v556
    %v573 = vpack.c.b16 %v559, %v558
    %v574 = vpack.c.b16 %v561, %v560
    %v575 = vpack.c.b16 %v563, %v562
    %v576 = vpack.c.b16 %v565, %v564
    %v577 = vpack.c.b16 %v567, %v566
    %v578 = vpack.c.b16 %v569, %v568
    %v579 = vpack.c.b16 %v571, %v570
    %588 = vmatprep.subr.bf16.mxu0 0
    %589 = vmatpush1.bf16.msra.mxu0 %v579
    %590 = vmatprep.subr.bf16.mxu0 0
    %591 = vmatpush1.bf16.msra.mxu0 %v578
    %592 = vmatprep.subr.bf16.mxu0 0
    %593 = vmatpush1.bf16.msra.mxu0 %v577
    %594 = vmatprep.subr.bf16.mxu0 0
    %595 = vmatpush1.bf16.msra.mxu0 %v576
    %596 = vmatprep.subr.bf16.mxu0 0
    %597 = vmatpush1.bf16.msra.mxu0 %v575
    %598 = vmatprep.subr.bf16.mxu0 0
    %599 = vmatpush1.bf16.msra.mxu0 %v574
    %600 = vmatprep.subr.bf16.mxu0 0
    %601 = vmatpush1.bf16.msra.mxu0 %v573
    %602 = vmatprep.subr.bf16.mxu0 0
    %603 = vmatpush1.bf16.msra.mxu0 %v572
    %604 = vmatprep.subr.bf16.mxu0 0
    %605 = vmatpush2.bf16.msra.mxu0 0
    %606 = vmatprep.subr.bf16.mxu0 0
    %607 = vmatpush2.bf16.msra.mxu0 0
    %608 = vmatprep.subr.bf16.mxu0 0
    %609 = vmatpush2.bf16.msra.mxu0 0
    %610 = vmatprep.subr.bf16.mxu0 0
    %611 = vmatpush2.bf16.msra.mxu0 0
    %612 = vmatprep.subr.bf16.mxu0 0
    %613 = vmatpush2.bf16.msra.mxu0 0
    %614 = vmatprep.subr.bf16.mxu0 0
    %615 = vmatpush2.bf16.msra.mxu0 0
    %616 = vmatprep.subr.bf16.mxu0 0
    %617 = vmatpush2.bf16.msra.mxu0 0
    %618 = vmatprep.subr.bf16.mxu0 0
    %619 = vmatpush2.bf16.msra.mxu0 0
    %620 = vmatprep.mubr.bf16.mxu0 0
    %621 = vmatmul.mubr.bf16.gmra.mxu0 %v539
    %v622 = vpop.f32.mrf.mxu0
    %v623 = vadd.f32 0.0, %v622
    %v624 = vpop.f32.mrf.mxu0
    %v625 = vpop.f32.mrf.mxu0
    %v626 = vadd.f32 0.0, %v625
    %v627 = vpop.f32.mrf.mxu0
    %628 = vdwg.mxu0
    %v629 = vpack.c.bf16 %v626, %v623
    %s630 = scalar_lea.vmem %s4, 3
    %v631 = vld [vmem:[%s630] sm:$0x1]
    %v633 = vlaneseq
    %v634 = vshrl.u32 %v633, 7
    %v635 = vsub.s32 0, %v634
    %v636 = vrot.slane %v631, %v635
    %638 = vmatprep.subr.bf16.mxu0 0
    %639 = vmatpush1.bf16.msra.mxu0 0
    %640 = vmatprep.subr.bf16.mxu0 0
    %641 = vmatpush1.bf16.msra.mxu0 0
    %642 = vmatprep.subr.bf16.mxu0 0
    %643 = vmatpush1.bf16.msra.mxu0 0
    %644 = vmatprep.subr.bf16.mxu0 0
    %645 = vmatpush1.bf16.msra.mxu0 0
    %646 = vmatprep.subr.bf16.mxu0 0
    %647 = vmatpush1.bf16.msra.mxu0 0
    %648 = vmatprep.subr.bf16.mxu0 0
    %649 = vmatpush1.bf16.msra.mxu0 0
    %650 = vmatprep.subr.bf16.mxu0 0
    %651 = vmatpush1.bf16.msra.mxu0 0
    %652 = vmatprep.subr.bf16.mxu0 0
    %653 = vmatpush1.bf16.msra.mxu0 %v629
    %654 = vmatprep.subr.bf16.mxu0 0
    %655 = vmatpush2.bf16.msra.mxu0 0
    %656 = vmatprep.subr.bf16.mxu0 0
    %657 = vmatpush2.bf16.msra.mxu0 0
    %658 = vmatprep.subr.bf16.mxu0 0
    %659 = vmatpush2.bf16.msra.mxu0 0
    %660 = vmatprep.subr.bf16.mxu0 0
    %661 = vmatpush2.bf16.msra.mxu0 0
    %662 = vmatprep.subr.bf16.mxu0 0
    %663 = vmatpush2.bf16.msra.mxu0 0
    %664 = vmatprep.subr.bf16.mxu0 0
    %665 = vmatpush2.bf16.msra.mxu0 0
    %666 = vmatprep.subr.bf16.mxu0 0
    %667 = vmatpush2.bf16.msra.mxu0 0
    %668 = vmatprep.subr.bf16.mxu0 0
    %669 = vmatpush2.bf16.msra.mxu0 0
    %670 = vmatprep.mubr.bf16.mxu0 0
    %671 = vmatmul.mubr.bf16.gmra.mxu0 %v159
    %v672 = vpop.f32.mrf.mxu0
    %v673 = vadd.f32 %v636, %v672
    %v674 = vpop.f32.mrf.mxu0
    %v675 = vpop.f32.mrf.mxu0
    %v676 = vadd.f32 %v636, %v675
    %v677 = vpop.f32.mrf.mxu0
    %678 = vdwg.mxu0
    %v679 = vmax.f32 %v673, 0.0
    %v680 = vmax.f32 %v676, 0.0
    %s681 = scalar_lea.vmem %s3, 256
    %v682 = vld [vmem:[%s681] sm:$0xf]
    %v683 = vld [vmem:[%s681 + $0x4] sm:$0xf]
    %v684 = vld [vmem:[%s681 + $0x8] sm:$0xf]
    %v685 = vld [vmem:[%s681 + $0xc] sm:$0xf]
    %v686 = vld [vmem:[%s681 + $0x10] sm:$0xf]
    %v687 = vld [vmem:[%s681 + $0x14] sm:$0xf]
    %v688 = vld [vmem:[%s681 + $0x18] sm:$0xf]
    %v689 = vld [vmem:[%s681 + $0x1c] sm:$0xf]
    %v690 = vld [vmem:[%s681 + $0x20] sm:$0xf]
    %v691 = vld [vmem:[%s681 + $0x24] sm:$0xf]
    %v692 = vld [vmem:[%s681 + $0x28] sm:$0xf]
    %v693 = vld [vmem:[%s681 + $0x2c] sm:$0xf]
    %v694 = vld [vmem:[%s681 + $0x30] sm:$0xf]
    %v695 = vld [vmem:[%s681 + $0x34] sm:$0xf]
    %v696 = vld [vmem:[%s681 + $0x38] sm:$0xf]
    %v697 = vld [vmem:[%s681 + $0x3c] sm:$0xf]
    %v698 = vpack.c.bf16 %v680, %v679
    %v715 = vunpack.c.l.b16 %v682
    %v716 = vunpack.c.l.b16 %v683
    %v717 = vunpack.c.l.b16 %v684
    %v718 = vunpack.c.l.b16 %v685
    %v719 = vunpack.c.l.b16 %v686
    %v720 = vunpack.c.l.b16 %v687
    %v721 = vunpack.c.l.b16 %v688
    %v722 = vunpack.c.l.b16 %v689
    %v723 = vunpack.c.l.b16 %v690
    %v724 = vunpack.c.l.b16 %v691
    %v725 = vunpack.c.l.b16 %v692
    %v726 = vunpack.c.l.b16 %v693
    %v727 = vunpack.c.l.b16 %v694
    %v728 = vunpack.c.l.b16 %v695
    %v729 = vunpack.c.l.b16 %v696
    %v730 = vunpack.c.l.b16 %v697
    %v731 = vpack.c.b16 %v716, %v715
    %v732 = vpack.c.b16 %v718, %v717
    %v733 = vpack.c.b16 %v720, %v719
    %v734 = vpack.c.b16 %v722, %v721
    %v735 = vpack.c.b16 %v724, %v723
    %v736 = vpack.c.b16 %v726, %v725
    %v737 = vpack.c.b16 %v728, %v727
    %v738 = vpack.c.b16 %v730, %v729
    %747 = vmatprep.subr.bf16.mxu0 0
    %748 = vmatpush1.bf16.msra.mxu0 %v738
    %749 = vmatprep.subr.bf16.mxu0 0
    %750 = vmatpush1.bf16.msra.mxu0 %v737
    %751 = vmatprep.subr.bf16.mxu0 0
    %752 = vmatpush1.bf16.msra.mxu0 %v736
    %753 = vmatprep.subr.bf16.mxu0 0
    %754 = vmatpush1.bf16.msra.mxu0 %v735
    %755 = vmatprep.subr.bf16.mxu0 0
    %756 = vmatpush1.bf16.msra.mxu0 %v734
    %757 = vmatprep.subr.bf16.mxu0 0
    %758 = vmatpush1.bf16.msra.mxu0 %v733
    %759 = vmatprep.subr.bf16.mxu0 0
    %760 = vmatpush1.bf16.msra.mxu0 %v732
    %761 = vmatprep.subr.bf16.mxu0 0
    %762 = vmatpush1.bf16.msra.mxu0 %v731
    %763 = vmatprep.subr.bf16.mxu0 0
    %764 = vmatpush2.bf16.msra.mxu0 0
    %765 = vmatprep.subr.bf16.mxu0 0
    %766 = vmatpush2.bf16.msra.mxu0 0
    %767 = vmatprep.subr.bf16.mxu0 0
    %768 = vmatpush2.bf16.msra.mxu0 0
    %769 = vmatprep.subr.bf16.mxu0 0
    %770 = vmatpush2.bf16.msra.mxu0 0
    %771 = vmatprep.subr.bf16.mxu0 0
    %772 = vmatpush2.bf16.msra.mxu0 0
    %773 = vmatprep.subr.bf16.mxu0 0
    %774 = vmatpush2.bf16.msra.mxu0 0
    %775 = vmatprep.subr.bf16.mxu0 0
    %776 = vmatpush2.bf16.msra.mxu0 0
    %777 = vmatprep.subr.bf16.mxu0 0
    %778 = vmatpush2.bf16.msra.mxu0 0
    %779 = vmatprep.mubr.bf16.mxu0 0
    %780 = vmatmul.mubr.bf16.gmra.mxu0 %v698
    %v781 = vpop.f32.mrf.mxu0
    %v782 = vadd.f32 0.0, %v781
    %v783 = vpop.f32.mrf.mxu0
    %v784 = vpop.f32.mrf.mxu0
    %v785 = vadd.f32 0.0, %v784
    %v786 = vpop.f32.mrf.mxu0
    %787 = vdwg.mxu0
    %v788 = vpack.c.bf16 %v785, %v782
    %s789 = scalar_lea.vmem %s4, 4
    %v790 = vld [vmem:[%s789] sm:$0x1]
    %v792 = vlaneseq
    %v793 = vshrl.u32 %v792, 7
    %v794 = vsub.s32 0, %v793
    %v795 = vrot.slane %v790, %v794
    %797 = vmatprep.subr.bf16.mxu0 0
    %798 = vmatpush1.bf16.msra.mxu0 0
    %799 = vmatprep.subr.bf16.mxu0 0
    %800 = vmatpush1.bf16.msra.mxu0 0
    %801 = vmatprep.subr.bf16.mxu0 0
    %802 = vmatpush1.bf16.msra.mxu0 0
    %803 = vmatprep.subr.bf16.mxu0 0
    %804 = vmatpush1.bf16.msra.mxu0 0
    %805 = vmatprep.subr.bf16.mxu0 0
    %806 = vmatpush1.bf16.msra.mxu0 0
    %807 = vmatprep.subr.bf16.mxu0 0
    %808 = vmatpush1.bf16.msra.mxu0 0
    %809 = vmatprep.subr.bf16.mxu0 0
    %810 = vmatpush1.bf16.msra.mxu0 0
    %811 = vmatprep.subr.bf16.mxu0 0
    %812 = vmatpush1.bf16.msra.mxu0 %v788
    %813 = vmatprep.subr.bf16.mxu0 0
    %814 = vmatpush2.bf16.msra.mxu0 0
    %815 = vmatprep.subr.bf16.mxu0 0
    %816 = vmatpush2.bf16.msra.mxu0 0
    %817 = vmatprep.subr.bf16.mxu0 0
    %818 = vmatpush2.bf16.msra.mxu0 0
    %819 = vmatprep.subr.bf16.mxu0 0
    %820 = vmatpush2.bf16.msra.mxu0 0
    %821 = vmatprep.subr.bf16.mxu0 0
    %822 = vmatpush2.bf16.msra.mxu0 0
    %823 = vmatprep.subr.bf16.mxu0 0
    %824 = vmatpush2.bf16.msra.mxu0 0
    %825 = vmatprep.subr.bf16.mxu0 0
    %826 = vmatpush2.bf16.msra.mxu0 0
    %827 = vmatprep.subr.bf16.mxu0 0
    %828 = vmatpush2.bf16.msra.mxu0 0
    %829 = vmatprep.mubr.bf16.mxu0 0
    %830 = vmatmul.mubr.bf16.gmra.mxu0 %v159
    %v831 = vpop.f32.mrf.mxu0
    %v832 = vadd.f32 %v795, %v831
    %v833 = vpop.f32.mrf.mxu0
    %v834 = vpop.f32.mrf.mxu0
    %v835 = vadd.f32 %v795, %v834
    %v836 = vpop.f32.mrf.mxu0
    %837 = vdwg.mxu0
    %v838 = vmax.f32 %v832, 0.0
    %v839 = vmax.f32 %v835, 0.0
    %s840 = scalar_lea.vmem %s3, 320
    %v841 = vld [vmem:[%s840] sm:$0xf]
    %v842 = vld [vmem:[%s840 + $0x4] sm:$0xf]
    %v843 = vld [vmem:[%s840 + $0x8] sm:$0xf]
    %v844 = vld [vmem:[%s840 + $0xc] sm:$0xf]
    %v845 = vld [vmem:[%s840 + $0x10] sm:$0xf]
    %v846 = vld [vmem:[%s840 + $0x14] sm:$0xf]
    %v847 = vld [vmem:[%s840 + $0x18] sm:$0xf]
    %v848 = vld [vmem:[%s840 + $0x1c] sm:$0xf]
    %v849 = vld [vmem:[%s840 + $0x20] sm:$0xf]
    %v850 = vld [vmem:[%s840 + $0x24] sm:$0xf]
    %v851 = vld [vmem:[%s840 + $0x28] sm:$0xf]
    %v852 = vld [vmem:[%s840 + $0x2c] sm:$0xf]
    %v853 = vld [vmem:[%s840 + $0x30] sm:$0xf]
    %v854 = vld [vmem:[%s840 + $0x34] sm:$0xf]
    %v855 = vld [vmem:[%s840 + $0x38] sm:$0xf]
    %v856 = vld [vmem:[%s840 + $0x3c] sm:$0xf]
    %v857 = vpack.c.bf16 %v839, %v838
    %v874 = vunpack.c.l.b16 %v841
    %v875 = vunpack.c.l.b16 %v842
    %v876 = vunpack.c.l.b16 %v843
    %v877 = vunpack.c.l.b16 %v844
    %v878 = vunpack.c.l.b16 %v845
    %v879 = vunpack.c.l.b16 %v846
    %v880 = vunpack.c.l.b16 %v847
    %v881 = vunpack.c.l.b16 %v848
    %v882 = vunpack.c.l.b16 %v849
    %v883 = vunpack.c.l.b16 %v850
    %v884 = vunpack.c.l.b16 %v851
    %v885 = vunpack.c.l.b16 %v852
    %v886 = vunpack.c.l.b16 %v853
    %v887 = vunpack.c.l.b16 %v854
    %v888 = vunpack.c.l.b16 %v855
    %v889 = vunpack.c.l.b16 %v856
    %v890 = vpack.c.b16 %v875, %v874
    %v891 = vpack.c.b16 %v877, %v876
    %v892 = vpack.c.b16 %v879, %v878
    %v893 = vpack.c.b16 %v881, %v880
    %v894 = vpack.c.b16 %v883, %v882
    %v895 = vpack.c.b16 %v885, %v884
    %v896 = vpack.c.b16 %v887, %v886
    %v897 = vpack.c.b16 %v889, %v888
    %906 = vmatprep.subr.bf16.mxu0 0
    %907 = vmatpush1.bf16.msra.mxu0 %v897
    %908 = vmatprep.subr.bf16.mxu0 0
    %909 = vmatpush1.bf16.msra.mxu0 %v896
    %910 = vmatprep.subr.bf16.mxu0 0
    %911 = vmatpush1.bf16.msra.mxu0 %v895
    %912 = vmatprep.subr.bf16.mxu0 0
    %913 = vmatpush1.bf16.msra.mxu0 %v894
    %914 = vmatprep.subr.bf16.mxu0 0
    %915 = vmatpush1.bf16.msra.mxu0 %v893
    %916 = vmatprep.subr.bf16.mxu0 0
    %917 = vmatpush1.bf16.msra.mxu0 %v892
    %918 = vmatprep.subr.bf16.mxu0 0
    %919 = vmatpush1.bf16.msra.mxu0 %v891
    %920 = vmatprep.subr.bf16.mxu0 0
    %921 = vmatpush1.bf16.msra.mxu0 %v890
    %922 = vmatprep.subr.bf16.mxu0 0
    %923 = vmatpush2.bf16.msra.mxu0 0
    %924 = vmatprep.subr.bf16.mxu0 0
    %925 = vmatpush2.bf16.msra.mxu0 0
    %926 = vmatprep.subr.bf16.mxu0 0
    %927 = vmatpush2.bf16.msra.mxu0 0
    %928 = vmatprep.subr.bf16.mxu0 0
    %929 = vmatpush2.bf16.msra.mxu0 0
    %930 = vmatprep.subr.bf16.mxu0 0
    %931 = vmatpush2.bf16.msra.mxu0 0
    %932 = vmatprep.subr.bf16.mxu0 0
    %933 = vmatpush2.bf16.msra.mxu0 0
    %934 = vmatprep.subr.bf16.mxu0 0
    %935 = vmatpush2.bf16.msra.mxu0 0
    %936 = vmatprep.subr.bf16.mxu0 0
    %937 = vmatpush2.bf16.msra.mxu0 0
    %938 = vmatprep.mubr.bf16.mxu0 0
    %939 = vmatmul.mubr.bf16.gmra.mxu0 %v857
    %v940 = vpop.f32.mrf.mxu0
    %v941 = vadd.f32 0.0, %v940
    %v942 = vpop.f32.mrf.mxu0
    %v943 = vpop.f32.mrf.mxu0
    %v944 = vadd.f32 0.0, %v943
    %v945 = vpop.f32.mrf.mxu0
    %946 = vdwg.mxu0
    %v947 = vpack.c.bf16 %v944, %v941
    %s948 = scalar_lea.vmem %s4, 5
    %v949 = vld [vmem:[%s948] sm:$0x1]
    %v951 = vlaneseq
    %v952 = vshrl.u32 %v951, 7
    %v953 = vsub.s32 0, %v952
    %v954 = vrot.slane %v949, %v953
    %956 = vmatprep.subr.bf16.mxu0 0
    %957 = vmatpush1.bf16.msra.mxu0 0
    %958 = vmatprep.subr.bf16.mxu0 0
    %959 = vmatpush1.bf16.msra.mxu0 0
    %960 = vmatprep.subr.bf16.mxu0 0
    %961 = vmatpush1.bf16.msra.mxu0 0
    %962 = vmatprep.subr.bf16.mxu0 0
    %963 = vmatpush1.bf16.msra.mxu0 0
    %964 = vmatprep.subr.bf16.mxu0 0
    %965 = vmatpush1.bf16.msra.mxu0 0
    %966 = vmatprep.subr.bf16.mxu0 0
    %967 = vmatpush1.bf16.msra.mxu0 0
    %968 = vmatprep.subr.bf16.mxu0 0
    %969 = vmatpush1.bf16.msra.mxu0 0
    %970 = vmatprep.subr.bf16.mxu0 0
    %971 = vmatpush1.bf16.msra.mxu0 %v947
    %972 = vmatprep.subr.bf16.mxu0 0
    %973 = vmatpush2.bf16.msra.mxu0 0
    %974 = vmatprep.subr.bf16.mxu0 0
    %975 = vmatpush2.bf16.msra.mxu0 0
    %976 = vmatprep.subr.bf16.mxu0 0
    %977 = vmatpush2.bf16.msra.mxu0 0
    %978 = vmatprep.subr.bf16.mxu0 0
    %979 = vmatpush2.bf16.msra.mxu0 0
    %980 = vmatprep.subr.bf16.mxu0 0
    %981 = vmatpush2.bf16.msra.mxu0 0
    %982 = vmatprep.subr.bf16.mxu0 0
    %983 = vmatpush2.bf16.msra.mxu0 0
    %984 = vmatprep.subr.bf16.mxu0 0
    %985 = vmatpush2.bf16.msra.mxu0 0
    %986 = vmatprep.subr.bf16.mxu0 0
    %987 = vmatpush2.bf16.msra.mxu0 0
    %988 = vmatprep.mubr.bf16.mxu0 0
    %989 = vmatmul.mubr.bf16.gmra.mxu0 %v159
    %v990 = vpop.f32.mrf.mxu0
    %v991 = vadd.f32 %v954, %v990
    %v992 = vpop.f32.mrf.mxu0
    %v993 = vpop.f32.mrf.mxu0
    %v994 = vadd.f32 %v954, %v993
    %v995 = vpop.f32.mrf.mxu0
    %996 = vdwg.mxu0
    %v997 = vmax.f32 %v991, 0.0
    %v998 = vmax.f32 %v994, 0.0
    %v999 = vld [vmem:[%s2] sm:$0xff]
    %v1000 = vld [vmem:[%s2 + $0x8] sm:$0xff]
    %1002 = vset.pattern.permute.xlu0 0
    %1003 = vperm.xlu0 %1002, %v999
    %v1004 = vpop.permute.xlu0 %1003
    %1007 = vset.pattern.permute.xlu0 0
    %1008 = vperm.xlu0 %1007, %v1000
    %v1009 = vpop.permute.xlu0 %1008
    %v1011 = vadd.f32 %v997, %v1004
    %v1012 = vadd.f32 %v998, %v1009
    %v1013 = vmax.f32 %v1011, %v1012
    %v1014 = vrot.slane %v1013, 4
    %v1015 = vmax.f32 %v1013, %v1014
    %v1016 = vrot.slane %v1015, 2
    %v1017 = vmax.f32 %v1015, %v1016
    %v1018 = vrot.slane %v1017, 1
    %v1019 = vmax.f32 %v1017, %v1018
    %1020 = vst [vmem:[#allocation2] sm:$0x1] %v1019
    %1021 = vset.pattern.permute.xlu0 1
    %1022 = vperm.xlu0 %1021, %v999
    %v1023 = vpop.permute.xlu0 %1022
    %1025 = vset.pattern.permute.xlu0 1
    %1026 = vperm.xlu0 %1025, %v1000
    %v1027 = vpop.permute.xlu0 %1026
    %v1029 = vadd.f32 %v997, %v1023
    %v1030 = vadd.f32 %v998, %v1027
    %v1031 = vmax.f32 %v1029, %v1030
    %v1032 = vrot.slane %v1031, 4
    %v1033 = vmax.f32 %v1031, %v1032
    %v1034 = vrot.slane %v1033, 2
    %v1035 = vmax.f32 %v1033, %v1034
    %v1036 = vrot.slane %v1035, 1
    %v1037 = vmax.f32 %v1035, %v1036
    %1038 = vst [vmem:[#allocation2 + $0x1] sm:$0x1] %v1037
    %v1039 = vld [vmem:[#allocation2] sm:$0x3]
    %v1040 = vpack.c.bf16 %v1039, %v1039
    %v1041 = vld [vmem:[%s5] sm:$0xf]
    %v1042 = vld [vmem:[%s5 + $0x4] sm:$0xf]
    %v1043 = vld [vmem:[%s5 + $0x8] sm:$0xf]
    %v1044 = vld [vmem:[%s5 + $0xc] sm:$0xf]
    %v1045 = vld [vmem:[%s5 + $0x10] sm:$0xf]
    %v1046 = vld [vmem:[%s5 + $0x14] sm:$0xf]
    %v1047 = vld [vmem:[%s5 + $0x18] sm:$0xf]
    %v1048 = vld [vmem:[%s5 + $0x1c] sm:$0xf]
    %v1049 = vld [vmem:[%s5 + $0x20] sm:$0xf]
    %v1050 = vld [vmem:[%s5 + $0x24] sm:$0xf]
    %v1051 = vld [vmem:[%s5 + $0x28] sm:$0xf]
    %v1052 = vld [vmem:[%s5 + $0x2c] sm:$0xf]
    %v1053 = vld [vmem:[%s5 + $0x30] sm:$0xf]
    %v1054 = vld [vmem:[%s5 + $0x34] sm:$0xf]
    %v1055 = vld [vmem:[%s5 + $0x38] sm:$0xf]
    %v1056 = vld [vmem:[%s5 + $0x3c] sm:$0xf]
    %v1057 = vld [vmem:[%s6] sm:$0x1]
    %v1059 = vlaneseq
    %v1060 = vshrl.u32 %v1059, 7
    %v1061 = vsub.s32 0, %v1060
    %v1062 = vrot.slane %v1057, %v1061
    %v1080 = vunpack.c.l.b16 %v1041
    %v1081 = vunpack.c.l.b16 %v1042
    %v1082 = vunpack.c.l.b16 %v1043
    %v1083 = vunpack.c.l.b16 %v1044
    %v1084 = vunpack.c.l.b16 %v1045
    %v1085 = vunpack.c.l.b16 %v1046
    %v1086 = vunpack.c.l.b16 %v1047
    %v1087 = vunpack.c.l.b16 %v1048
    %v1088 = vunpack.c.l.b16 %v1049
    %v1089 = vunpack.c.l.b16 %v1050
    %v1090 = vunpack.c.l.b16 %v1051
    %v1091 = vunpack.c.l.b16 %v1052
    %v1092 = vunpack.c.l.b16 %v1053
    %v1093 = vunpack.c.l.b16 %v1054
    %v1094 = vunpack.c.l.b16 %v1055
    %v1095 = vunpack.c.l.b16 %v1056
    %v1096 = vpack.c.b16 %v1081, %v1080
    %v1097 = vpack.c.b16 %v1083, %v1082
    %v1098 = vpack.c.b16 %v1085, %v1084
    %v1099 = vpack.c.b16 %v1087, %v1086
    %v1100 = vpack.c.b16 %v1089, %v1088
    %v1101 = vpack.c.b16 %v1091, %v1090
    %v1102 = vpack.c.b16 %v1093, %v1092
    %v1103 = vpack.c.b16 %v1095, %v1094
    %1112 = vmatprep.subr.bf16.mxu0 0
    %1113 = vmatpush1.bf16.msra.mxu0 %v1103
    %1114 = vmatprep.subr.bf16.mxu0 0
    %1115 = vmatpush1.bf16.msra.mxu0 %v1102
    %1116 = vmatprep.subr.bf16.mxu0 0
    %1117 = vmatpush1.bf16.msra.mxu0 %v1101
    %1118 = vmatprep.subr.bf16.mxu0 0
    %1119 = vmatpush1.bf16.msra.mxu0 %v1100
    %1120 = vmatprep.subr.bf16.mxu0 0
    %1121 = vmatpush1.bf16.msra.mxu0 %v1099
    %1122 = vmatprep.subr.bf16.mxu0 0
    %1123 = vmatpush1.bf16.msra.mxu0 %v1098
    %1124 = vmatprep.subr.bf16.mxu0 0
    %1125 = vmatpush1.bf16.msra.mxu0 %v1097
    %1126 = vmatprep.subr.bf16.mxu0 0
    %1127 = vmatpush1.bf16.msra.mxu0 %v1096
    %1128 = vmatprep.subr.bf16.mxu0 0
    %1129 = vmatpush2.bf16.msra.mxu0 0
    %1130 = vmatprep.subr.bf16.mxu0 0
    %1131 = vmatpush2.bf16.msra.mxu0 0
    %1132 = vmatprep.subr.bf16.mxu0 0
    %1133 = vmatpush2.bf16.msra.mxu0 0
    %1134 = vmatprep.subr.bf16.mxu0 0
    %1135 = vmatpush2.bf16.msra.mxu0 0
    %1136 = vmatprep.subr.bf16.mxu0 0
    %1137 = vmatpush2.bf16.msra.mxu0 0
    %1138 = vmatprep.subr.bf16.mxu0 0
    %1139 = vmatpush2.bf16.msra.mxu0 0
    %1140 = vmatprep.subr.bf16.mxu0 0
    %1141 = vmatpush2.bf16.msra.mxu0 0
    %1142 = vmatprep.subr.bf16.mxu0 0
    %1143 = vmatpush2.bf16.msra.mxu0 0
    %1144 = vmatprep.mubr.bf16.mxu0 0
    %1145 = vmatmul.mubr.bf16.gmra.mxu0 %v1040
    %v1146 = vpop.f32.mrf.mxu0
    %v1147 = vadd.f32 %v1062, %v1146
    %v1148 = vpop.f32.mrf.mxu0
    %v1149 = vpop.f32.mrf.mxu0
    %v1150 = vpop.f32.mrf.mxu0
    %1151 = vdwg.mxu0
    %v1152 = vmax.f32 %v1147, 0.0
    %v1153 = vpack.c.bf16 %v1152, %v1152
    %v1154 = vld [vmem:[%s7] sm:$0xf]
    %v1155 = vld [vmem:[%s7 + $0x4] sm:$0xf]
    %v1156 = vld [vmem:[%s7 + $0x8] sm:$0xf]
    %v1157 = vld [vmem:[%s7 + $0xc] sm:$0xf]
    %v1158 = vld [vmem:[%s7 + $0x10] sm:$0xf]
    %v1159 = vld [vmem:[%s7 + $0x14] sm:$0xf]
    %v1160 = vld [vmem:[%s7 + $0x18] sm:$0xf]
    %v1161 = vld [vmem:[%s7 + $0x1c] sm:$0xf]
    %v1162 = vld [vmem:[%s7 + $0x20] sm:$0xf]
    %v1163 = vld [vmem:[%s7 + $0x24] sm:$0xf]
    %v1164 = vld [vmem:[%s7 + $0x28] sm:$0xf]
    %v1165 = vld [vmem:[%s7 + $0x2c] sm:$0xf]
    %v1166 = vld [vmem:[%s7 + $0x30] sm:$0xf]
    %v1167 = vld [vmem:[%s7 + $0x34] sm:$0xf]
    %v1168 = vld [vmem:[%s7 + $0x38] sm:$0xf]
    %v1169 = vld [vmem:[%s7 + $0x3c] sm:$0xf]
    %v1170 = vld [vmem:[%s8] sm:$0x1]
    %v1172 = vlaneseq
    %v1173 = vshrl.u32 %v1172, 7
    %v1174 = vsub.s32 0, %v1173
    %v1175 = vrot.slane %v1170, %v1174
    %v1193 = vunpack.c.l.b16 %v1154
    %v1194 = vunpack.c.l.b16 %v1155
    %v1195 = vunpack.c.l.b16 %v1156
    %v1196 = vunpack.c.l.b16 %v1157
    %v1197 = vunpack.c.l.b16 %v1158
    %v1198 = vunpack.c.l.b16 %v1159
    %v1199 = vunpack.c.l.b16 %v1160
    %v1200 = vunpack.c.l.b16 %v1161
    %v1201 = vunpack.c.l.b16 %v1162
    %v1202 = vunpack.c.l.b16 %v1163
    %v1203 = vunpack.c.l.b16 %v1164
    %v1204 = vunpack.c.l.b16 %v1165
    %v1205 = vunpack.c.l.b16 %v1166
    %v1206 = vunpack.c.l.b16 %v1167
    %v1207 = vunpack.c.l.b16 %v1168
    %v1208 = vunpack.c.l.b16 %v1169
    %v1209 = vpack.c.b16 %v1194, %v1193
    %v1210 = vpack.c.b16 %v1196, %v1195
    %v1211 = vpack.c.b16 %v1198, %v1197
    %v1212 = vpack.c.b16 %v1200, %v1199
    %v1213 = vpack.c.b16 %v1202, %v1201
    %v1214 = vpack.c.b16 %v1204, %v1203
    %v1215 = vpack.c.b16 %v1206, %v1205
    %v1216 = vpack.c.b16 %v1208, %v1207
    %1225 = vmatprep.subr.bf16.mxu0 0
    %1226 = vmatpush1.bf16.msra.mxu0 %v1216
    %1227 = vmatprep.subr.bf16.mxu0 0
    %1228 = vmatpush1.bf16.msra.mxu0 %v1215
    %1229 = vmatprep.subr.bf16.mxu0 0
    %1230 = vmatpush1.bf16.msra.mxu0 %v1214
    %1231 = vmatprep.subr.bf16.mxu0 0
    %1232 = vmatpush1.bf16.msra.mxu0 %v1213
    %1233 = vmatprep.subr.bf16.mxu0 0
    %1234 = vmatpush1.bf16.msra.mxu0 %v1212
    %1235 = vmatprep.subr.bf16.mxu0 0
    %1236 = vmatpush1.bf16.msra.mxu0 %v1211
    %1237 = vmatprep.subr.bf16.mxu0 0
    %1238 = vmatpush1.bf16.msra.mxu0 %v1210
    %1239 = vmatprep.subr.bf16.mxu0 0
    %1240 = vmatpush1.bf16.msra.mxu0 %v1209
    %1241 = vmatprep.subr.bf16.mxu0 0
    %1242 = vmatpush2.bf16.msra.mxu0 0
    %1243 = vmatprep.subr.bf16.mxu0 0
    %1244 = vmatpush2.bf16.msra.mxu0 0
    %1245 = vmatprep.subr.bf16.mxu0 0
    %1246 = vmatpush2.bf16.msra.mxu0 0
    %1247 = vmatprep.subr.bf16.mxu0 0
    %1248 = vmatpush2.bf16.msra.mxu0 0
    %1249 = vmatprep.subr.bf16.mxu0 0
    %1250 = vmatpush2.bf16.msra.mxu0 0
    %1251 = vmatprep.subr.bf16.mxu0 0
    %1252 = vmatpush2.bf16.msra.mxu0 0
    %1253 = vmatprep.subr.bf16.mxu0 0
    %1254 = vmatpush2.bf16.msra.mxu0 0
    %1255 = vmatprep.subr.bf16.mxu0 0
    %1256 = vmatpush2.bf16.msra.mxu0 0
    %1257 = vmatprep.mubr.bf16.mxu0 0
    %1258 = vmatmul.mubr.bf16.gmra.mxu0 %v1153
    %v1259 = vpop.f32.mrf.mxu0
    %v1260 = vadd.f32 %v1175, %v1259
    %v1261 = vpop.f32.mrf.mxu0
    %v1262 = vpop.f32.mrf.mxu0
    %v1263 = vpop.f32.mrf.mxu0
    %1264 = vdwg.mxu0
    %1265 = vst [vmem:[#allocation3] sm:$0x3] %v1260
    // Predicated region
    $region38: #{net_forward.1} parent=1 // pred_check
      _
    $region39: #{net_forward.1} parent=1 // pred_check_branch
      %1267 = sbr.rel (0) target = $region41
    $region40: #{net_forward.1} parent=1 // pred_region
      %s1269 = ssub.s32 32, 32
      %1270 = vsyncadd [#allocation4], %s1269
      %s1272 = sshll.u32 [#allocation3], 4
      %s1273 = int_to_ptr.vmem [resolvable:$true] %s1272
      %1275 = dma.vmem_to_hbm [thread:$0]  %s1273, 32, %s9, [#allocation4]
    $region41: #{net_forward.1} parent=1 // pred_fallthru
      _
    // Predicated region
    $region42: #{net_forward.1} parent=1 // pred_check
      _
    $region43: #{net_forward.1} parent=1 // pred_check_branch
      %1277 = sbr.rel (0) target = $region45
    $region44: #{net_forward.1} parent=1 // pred_region
      %1278 = dma.done [#allocation4], 32
    $region45: #{net_forward.1} parent=1 // pred_fallthru
      _
    %1279 = vsyncpa [#allocation4], 1

</llo_original>
